<compile_context>
chip_gen: v7x
topology: tpu7x:2x2x1
jax: 0.10.0
libtpu: 0.0.40
codegen_flags: <defaults>
</compile_context>

<pallas_src>
import functools

import jax
import jax.numpy as jnp
from jax.experimental import pallas as pl
from jax.experimental.pallas import tpu as pltpu

LANES = 128
SUBLANES = 8
# ~2 MiB per f32 input tile (4096 * 128 * 4 B). Keeps 2 inputs x 2 buffers
# within v5e's 16 MiB scoped-VMEM default; plenty of headroom on v6e/v7x.
DEFAULT_MAX_BLOCK_ROWS = 4096


def _round_up(x, m):
    return (x + m - 1) // m * m


def dice_loss(predicted, target, smooth=1e-06, *,
              max_block_rows=DEFAULT_MAX_BLOCK_ROWS, num_core_splits=2):
    assert predicted.shape == target.shape

    p = jnp.ravel(predicted)
    t = jnp.ravel(target)
    # Keep native floating dtype (kernel casts in-VMEM); only promote non-float
    # inputs (e.g. bool/int masks) which Mosaic handles less uniformly.
    if not jnp.issubdtype(p.dtype, jnp.floating):
        p = p.astype(jnp.float32)
    if not jnp.issubdtype(t.dtype, jnp.floating):
        t = t.astype(jnp.float32)

    n = p.shape[0]
    # Pad only to a (8,128)-aligned element count; zero padding is sum-neutral.
    n_pad = _round_up(n, SUBLANES * LANES)
    if n_pad != n:
        p = jnp.pad(p, (0, n_pad - n))
        t = jnp.pad(t, (0, n_pad - n))

    rows = n_pad // LANES                     # multiple of 8
    p2 = p.reshape(rows, LANES)
    t2 = t.reshape(rows, LANES)

    block_rows = min(rows, _round_up(max(int(max_block_rows), SUBLANES), SUBLANES))
    n_row_blocks = (rows + block_rows - 1) // block_rows
    ncores = num_core_splits if n_row_blocks >= 2 else 1
    steps_per_core = (n_row_blocks + ncores - 1) // ncores

    covered_rows = ncores * steps_per_core * block_rows
    need_mask = covered_rows > rows                       # partial / OOB blocks
    need_clamp = ncores * steps_per_core > n_row_blocks   # logical block idx OOB

    if need_clamp:
        def row_map(c, i):
            return (jnp.minimum(c * steps_per_core + i, n_row_blocks - 1), 0)
    else:
        def row_map(c, i):
            return (c * steps_per_core + i, 0)

    def kernel(p_ref, t_ref, inter_ref, union_ref):
        c = pl.program_id(0)
        i = pl.program_id(1)

        # The output blocks (one per core) double as accumulators: same block
        # index for every i, so they stay resident in VMEM across the
        # "arbitrary" reduction axis.
        @pl.when(i == 0)
        def _init():
            inter_ref[...] = jnp.zeros_like(inter_ref)
            union_ref[...] = jnp.zeros_like(union_ref)

        pb = p_ref[...].astype(jnp.float32)
        tb = t_ref[...].astype(jnp.float32)

        if need_mask:
            # Mask rows beyond the real array extent (tail tiles and clamped
            # duplicate blocks contribute exactly 0).
            base = (c * steps_per_core + i) * block_rows
            row_ids = base + jax.lax.broadcasted_iota(
                jnp.int32, (block_rows, LANES), 0)
            valid = row_ids < rows
            zero = jnp.float32(0.0)
            pb = jnp.where(valid, pb, zero)
            tb = jnp.where(valid, tb, zero)

        # Lane/sublane-parallel partial sums: fold the tile down to one (8,128)
        # vreg with pure VPU adds (no cross-lane reduce on the per-step path).
        n_sub = block_rows // SUBLANES
        inter_p = (pb * tb).reshape(n_sub, SUBLANES, LANES).sum(axis=0)
        union_p = (pb + tb).reshape(n_sub, SUBLANES, LANES).sum(axis=0)
        inter_ref[...] += inter_p.reshape(1, SUBLANES, LANES)
        union_ref[...] += union_p.reshape(1, SUBLANES, LANES)

    out_sds = jax.ShapeDtypeStruct((ncores, SUBLANES, LANES), jnp.float32)
    partial_inter, partial_union = pl.pallas_call(
        kernel,
        out_shape=(out_sds, out_sds),
        grid_spec=pltpu.PrefetchScalarGridSpec(
            num_scalar_prefetch=0,
            grid=(ncores, steps_per_core),
            in_specs=[
                pl.BlockSpec((block_rows, LANES), row_map),
                pl.BlockSpec((block_rows, LANES), row_map),
            ],
            out_specs=(
                pl.BlockSpec((1, SUBLANES, LANES), lambda c, i: (c, 0, 0)),
                pl.BlockSpec((1, SUBLANES, LANES), lambda c, i: (c, 0, 0)),
            ),
        ),
        compiler_params=pltpu.CompilerParams(
            dimension_semantics=("parallel", "arbitrary"),
        ),
    )(p2, t2)

    # Final tiny reduction + dice math on (ncores, 8, 128) partials.
    intersection = jnp.sum(partial_inter)
    union = jnp.sum(partial_union)
    smooth = jnp.float32(smooth)
    dice = (2.0 * intersection + smooth) / (union + smooth)
    return (1.0 - dice).astype(jnp.float32)


def _dice_ref(predicted, target, smooth=1e-06):
    predicted = predicted.astype(jnp.float32)
    target = target.astype(jnp.float32)
    inter = jnp.sum(predicted * target)
    union = jnp.sum(predicted) + jnp.sum(target)
    return 1.0 - (2.0 * inter + smooth) / (union + smooth)


if __name__ == "__main__":
    key = jax.random.PRNGKey(0)

    # Test 1: canonical NCHW [2, 4, 16, 16] (aligned: no padding, single tile).
    k1, k2, key = jax.random.split(key, 3)
    predicted = jax.nn.sigmoid(jax.random.normal(k1, (2, 4, 16, 16), dtype=jnp.float32))
    target = (jax.random.uniform(k2, (2, 4, 16, 16)) > 0.5).astype(jnp.float32)
    loss = dice_loss(predicted, target)
    jax.block_until_ready(loss)
    ref = _dice_ref(predicted, target)
    assert jnp.allclose(loss, ref, rtol=1e-5, atol=1e-6), (loss, ref)

    # Test 2: non-aligned element count (exercises the minimal zero padding).
    k1, k2, key = jax.random.split(key, 3)
    p2 = jax.nn.sigmoid(jax.random.normal(k1, (2, 3, 15, 17), dtype=jnp.float32))
    t2 = (jax.random.uniform(k2, (2, 3, 15, 17)) > 0.5).astype(jnp.float32)
    loss2 = dice_loss(p2, t2)
    jax.block_until_ready(loss2)
    ref2 = _dice_ref(p2, t2)
    assert jnp.allclose(loss2, ref2, rtol=1e-5, atol=1e-6), (loss2, ref2)

    # Test 3: force small tiles so the 2-way core split, index clamping and
    # in-kernel row masking paths are exercised at small size.
    k1, k2, key = jax.random.split(key, 3)
    p3 = jax.nn.sigmoid(jax.random.normal(k1, (3, 8, 128), dtype=jnp.float32))
    t3 = (jax.random.uniform(k2, (3, 8, 128)) > 0.5).astype(jnp.float32)
    loss3 = dice_loss(p3, t3, max_block_rows=8, num_core_splits=2)
    jax.block_until_ready(loss3)
    ref3 = _dice_ref(p3, t3)
    assert jnp.allclose(loss3, ref3, rtol=1e-5, atol=1e-6), (loss3, ref3)

    print("KERNEL_OK")
</pallas_src>

<mosaic_0001>
module attributes {stable_mosaic.version = 11 : i64} {
  func.func @kernel(%arg0: i32, %arg1: i32, %arg2: memref<16x128xf32, #tpu.memory_space<vmem>>, %arg3: memref<16x128xf32, #tpu.memory_space<vmem>>, %arg4: memref<1x8x128xf32, #tpu.memory_space<vmem>>, %arg5: memref<1x8x128xf32, #tpu.memory_space<vmem>>) attributes {dimension_semantics = [#tpu.dimension_semantics<parallel>, #tpu.dimension_semantics<arbitrary>], iteration_bounds = array<i64: 1, 1>, scalar_prefetch = 0 : i64, scratch_operands = 0 : i64, tpu.core_type = #tpu.core_type<tc>, window_params = [{transform_indices = @transform_0, window_bounds = array<i64: 16, 128>}, {transform_indices = @transform_1, window_bounds = array<i64: 16, 128>}, {transform_indices = @transform_2, window_bounds = array<i64: 1, 8, 128>}, {transform_indices = @transform_3, window_bounds = array<i64: 1, 8, 128>}]} {
    %c0_i32 = arith.constant 0 : i32
    %0 = arith.cmpi eq, %arg1, %c0_i32 : i32
    %1 = arith.extui %0 : i1 to i32
    %c0_i32_0 = arith.constant 0 : i32
    %2 = arith.cmpi ne, %1, %c0_i32_0 : i32
    scf.if %2 {
      %cst_17 = arith.constant 0.000000e+00 : f32
      %19 = vector.broadcast %cst_17 : f32 to vector<1x8x128xf32>
      %c0_18 = arith.constant 0 : index
      %c0_19 = arith.constant 0 : index
      %c0_20 = arith.constant 0 : index
      %20 = vector.load %arg4[%c0_18, %c0_19, %c0_20] : memref<1x8x128xf32, #tpu.memory_space<vmem>>, vector<1x8x128xf32>
      tpu.vector_store %arg4[%c0_18, %c0_19, %c0_20], %19 {strides = array<i32>} : memref<1x8x128xf32, #tpu.memory_space<vmem>>, vector<1x8x128xf32>,
      %cst_21 = arith.constant 0.000000e+00 : f32
      %21 = vector.broadcast %cst_21 : f32 to vector<1x8x128xf32>
      %c0_22 = arith.constant 0 : index
      %c0_23 = arith.constant 0 : index
      %c0_24 = arith.constant 0 : index
      %22 = vector.load %arg5[%c0_22, %c0_23, %c0_24] : memref<1x8x128xf32, #tpu.memory_space<vmem>>, vector<1x8x128xf32>
      tpu.vector_store %arg5[%c0_22, %c0_23, %c0_24], %21 {strides = array<i32>} : memref<1x8x128xf32, #tpu.memory_space<vmem>>, vector<1x8x128xf32>,
    } else {
    }
    %c0 = arith.constant 0 : index
    %c0_1 = arith.constant 0 : index
    %3 = vector.load %arg2[%c0, %c0_1] : memref<16x128xf32, #tpu.memory_space<vmem>>, vector<16x128xf32>
    %c0_2 = arith.constant 0 : index
    %c0_3 = arith.constant 0 : index
    %4 = vector.load %arg3[%c0_2, %c0_3] : memref<16x128xf32, #tpu.memory_space<vmem>>, vector<16x128xf32>
    %5 = arith.mulf %3, %4 : vector<16x128xf32>
    %6 = vector.shape_cast %5 : vector<16x128xf32> to vector<2x8x128xf32>
    %cst = arith.constant dense<0.000000e+00> : vector<8x128xf32>
    %7 = vector.multi_reduction <add>, %6, %cst [0] : vector<2x8x128xf32> to vector<8x128xf32>
    %8 = arith.addf %3, %4 : vector<16x128xf32>
    %9 = vector.shape_cast %8 : vector<16x128xf32> to vector<2x8x128xf32>
    %cst_4 = arith.constant dense<0.000000e+00> : vector<8x128xf32>
    %10 = vector.multi_reduction <add>, %9, %cst_4 [0] : vector<2x8x128xf32> to vector<8x128xf32>
    %c0_5 = arith.constant 0 : index
    %c0_6 = arith.constant 0 : index
    %c0_7 = arith.constant 0 : index
    %11 = vector.load %arg4[%c0_5, %c0_6, %c0_7] : memref<1x8x128xf32, #tpu.memory_space<vmem>>, vector<1x8x128xf32>
    %12 = vector.shape_cast %7 : vector<8x128xf32> to vector<1x8x128xf32>
    %13 = arith.addf %11, %12 : vector<1x8x128xf32>
    %c0_8 = arith.constant 0 : index
    %c0_9 = arith.constant 0 : index
    %c0_10 = arith.constant 0 : index
    %14 = vector.load %arg4[%c0_8, %c0_9, %c0_10] : memref<1x8x128xf32, #tpu.memory_space<vmem>>, vector<1x8x128xf32>
    tpu.vector_store %arg4[%c0_8, %c0_9, %c0_10], %13 {strides = array<i32>} : memref<1x8x128xf32, #tpu.memory_space<vmem>>, vector<1x8x128xf32>,
    %c0_11 = arith.constant 0 : index
    %c0_12 = arith.constant 0 : index
    %c0_13 = arith.constant 0 : index
    %15 = vector.load %arg5[%c0_11, %c0_12, %c0_13] : memref<1x8x128xf32, #tpu.memory_space<vmem>>, vector<1x8x128xf32>
    %16 = vector.shape_cast %10 : vector<8x128xf32> to vector<1x8x128xf32>
    %17 = arith.addf %15, %16 : vector<1x8x128xf32>
    %c0_14 = arith.constant 0 : index
    %c0_15 = arith.constant 0 : index
    %c0_16 = arith.constant 0 : index
    %18 = vector.load %arg5[%c0_14, %c0_15, %c0_16] : memref<1x8x128xf32, #tpu.memory_space<vmem>>, vector<1x8x128xf32>
    tpu.vector_store %arg5[%c0_14, %c0_15, %c0_16], %17 {strides = array<i32>} : memref<1x8x128xf32, #tpu.memory_space<vmem>>, vector<1x8x128xf32>,
    return
  }
  func.func @transform_0(%arg0: i32, %arg1: i32) -> (i32, i32) {
    %c1_i32 = arith.constant 1 : i32
    %0 = arith.muli %arg0, %c1_i32 : i32
    %1 = arith.addi %0, %arg1 : i32
    %c0_i32 = arith.constant 0 : i32
    %c0_i32_0 = arith.constant 0 : i32
    return %1, %c0_i32 : i32, i32
  }
  func.func @transform_1(%arg0: i32, %arg1: i32) -> (i32, i32) {
    %c1_i32 = arith.constant 1 : i32
    %0 = arith.muli %arg0, %c1_i32 : i32
    %1 = arith.addi %0, %arg1 : i32
    %c0_i32 = arith.constant 0 : i32
    %c0_i32_0 = arith.constant 0 : i32
    return %1, %c0_i32 : i32, i32
  }
  func.func @transform_2(%arg0: i32, %arg1: i32) -> (i32, i32, i32) {
    %c0_i32 = arith.constant 0 : i32
    %c0_i32_0 = arith.constant 0 : i32
    %c0_i32_1 = arith.constant 0 : i32
    return %arg0, %c0_i32, %c0_i32_0 : i32, i32, i32
  }
  func.func @transform_3(%arg0: i32, %arg1: i32) -> (i32, i32, i32) {
    %c0_i32 = arith.constant 0 : i32
    %c0_i32_0 = arith.constant 0 : i32
    %c0_i32_1 = arith.constant 0 : i32
    return %arg0, %c0_i32, %c0_i32_0 : i32, i32, i32
  }
}

</mosaic_0001>

<llo_original>
// kernel: tpu_custom_call.1
$region0: #{tpu_custom_call.1}
  #allocation0 [shape = 'u32[]', space=smem, size = 0x4, offset = 0x4, fixed_abs, tag = 'smem constant byte address 0x4 - core index']
  #allocation1 [shape = 'u32[144,128]{1,0:T(1,128)}', space=vmem, size = 0x12000, scoped, tag = 'internal scratch']
  %s0 = inlined_call_operand.hbm [shape: f32[16,128], index: 0, kind: input, shape index: {}]
  %s1 = inlined_call_operand.hbm [shape: f32[16,128], index: 1, kind: input, shape index: {}]
  %s2 = inlined_call_operand.hbm [shape: f32[1,8,128], index: 2, kind: output, shape index: {0}]
  %s3 = inlined_call_operand.hbm [shape: f32[1,8,128], index: 3, kind: output, shape index: {1}]
  %4 = xla_tuple %s2, %s3
  %s5 = sld [smem:[#allocation0]]
  $region38: #{tpu_custom_call.1} parent=0
    _
  %s7 = ssub.s32 1, %s5
  %s8 = scalar_select 0, %s7, %s5
  $region1: #{tpu_custom_call.1} parent=0
    #allocation2 [shape = 'u8[8192]{0}', space=vmem, size = 0x2000, scoped, tag = 'input window, operand 0, single buffered']
    #allocation3 [shape = 's32[1]{0}', space=sflag, size = 0x4, scoped, tag = 'scoped memory for tpu_custom_call.1']
    #allocation4 [shape = 's32[1]{0}', space=sflag, size = 0x4, scoped, tag = 'scoped memory for tpu_custom_call.1']
    #allocation5 [shape = 'u8[8192]{0}', space=vmem, size = 0x2000, scoped, tag = 'input window, operand 1, single buffered']
    #allocation6 [shape = 's32[1]{0}', space=sflag, size = 0x4, scoped, tag = 'scoped memory for tpu_custom_call.1']
    #allocation7 [shape = 'u8[4096]{0}', space=vmem, size = 0x1000, scoped, tag = 'output window, operand 0, single buffered']
    #allocation8 [shape = 'u8[4096]{0}', space=vmem, size = 0x1000, scoped, tag = 'output window, operand 1, single buffered']
    #allocation9 [shape = 's32[1]{0}', space=sflag, size = 0x4, scoped, tag = 'scoped memory for tpu_custom_call.1']
    %9 = vsyncpa [#allocation3], 0
    %10 = vsyncpa [#allocation6], 0
    %11 = vsyncpa [#allocation4], 0
    %12 = vsyncpa [#allocation9], 0
    // Predicated region
    $region2: #{tpu_custom_call.1} parent=1 // pred_check
      _
    $region3: #{tpu_custom_call.1} parent=1 // pred_check_branch
      %14 = sbr.rel (0) target = $region5
    $region4: #{tpu_custom_call.1} parent=1 // pred_region
      %s15 = sadd.s32 0, 0
      %s16 = smul.u32 2, %s15
      %s18 = ssub.s32 256, 256
      %19 = vsyncadd [#allocation3], %s18
      %s20 = smul.addr %s16, 128
      %s21 = scalar_lea.hbm %s0, %s20
      %s22 = sshll.u32 [#allocation2], 4
      %s23 = int_to_ptr.vmem [resolvable:$true] %s22
      %28 = dma.hbm_to_vmem [thread:$0]  %s21, 256, %s23, [#allocation3], 128, 128, 8
    $region5: #{tpu_custom_call.1} parent=1 // pred_fallthru
      _
    // Predicated region
    $region6: #{tpu_custom_call.1} parent=1 // pred_check
      _
    $region7: #{tpu_custom_call.1} parent=1 // pred_check_branch
      %30 = sbr.rel (0) target = $region9
    $region8: #{tpu_custom_call.1} parent=1 // pred_region
      %s31 = sadd.s32 0, 0
      %s32 = smul.u32 2, %s31
      %s34 = ssub.s32 256, 256
      %35 = vsyncadd [#allocation6], %s34
      %s36 = smul.addr %s32, 128
      %s37 = scalar_lea.hbm %s1, %s36
      %s38 = sshll.u32 [#allocation5], 4
      %s39 = int_to_ptr.vmem [resolvable:$true] %s38
      %44 = dma.hbm_to_vmem [thread:$0]  %s37, 256, %s39, [#allocation6], 128, 128, 8
    $region9: #{tpu_custom_call.1} parent=1 // pred_fallthru
      _
    // Predicated region
    $region10: #{tpu_custom_call.1} parent=1 // pred_check
      _
    $region11: #{tpu_custom_call.1} parent=1 // pred_check_branch
      %46 = sbr.rel (0) target = $region13
    $region12: #{tpu_custom_call.1} parent=1 // pred_region
      %47 = dma.done [#allocation3], 256
    $region13: #{tpu_custom_call.1} parent=1 // pred_fallthru
      _
    // Predicated region
    $region14: #{tpu_custom_call.1} parent=1 // pred_check
      _
    $region15: #{tpu_custom_call.1} parent=1 // pred_check_branch
      %49 = sbr.rel (0) target = $region17
    $region16: #{tpu_custom_call.1} parent=1 // pred_region
      %50 = dma.done [#allocation6], 256
    $region17: #{tpu_custom_call.1} parent=1 // pred_fallthru
      _
    %s51 = sadd.s32 0, 0
    %s52 = smul.u32 2, %s51
    %s53 = sadd.s32 0, 0
    %s54 = smul.u32 2, %s53
    %p55 = scmp.eq.s32.totalorder 0, 0
    // Predicated region
    $region18: #{tpu_custom_call.1} parent=1 // pred_check
      %p56 = pneg %p55
    $region19: #{tpu_custom_call.1} parent=1 // pred_check_branch
      %58 = sbr.rel (%p56) target = $region21
    $region20: #{tpu_custom_call.1} parent=1 // pred_region
      %59 = vst [vmem:[#allocation7] sm:$0xff] 0.0
      %60 = vst [vmem:[#allocation8] sm:$0xff] 0.0
    $region21: #{tpu_custom_call.1} parent=1 // pred_fallthru
      _
    %v61 = vld [vmem:[#allocation2] sm:$0xff]
    %v62 = vld [vmem:[#allocation2 + $0x8] sm:$0xff]
    %v63 = vld [vmem:[#allocation5] sm:$0xff]
    %v64 = vld [vmem:[#allocation5 + $0x8] sm:$0xff]
    %v65 = vmul.f32 %v61, %v63
    %v66 = vmul.f32 %v62, %v64
    %v67 = vadd.f32 %v65, %v66
    %v68 = vadd.f32 %v61, %v63
    %v69 = vadd.f32 %v62, %v64
    %v70 = vadd.f32 %v68, %v69
    %v71 = vld [vmem:[#allocation7] sm:$0xff]
    %v72 = vadd.f32 %v71, %v67
    %73 = vst [vmem:[#allocation7] sm:$0xff] %v72
    %v74 = vld [vmem:[#allocation8] sm:$0xff]
    %v75 = vadd.f32 %v74, %v70
    %76 = vst [vmem:[#allocation8] sm:$0xff] %v75
    // Predicated region
    $region22: #{tpu_custom_call.1} parent=1 // pred_check
      _
    $region23: #{tpu_custom_call.1} parent=1 // pred_check_branch
      %78 = sbr.rel (0) target = $region25
    $region24: #{tpu_custom_call.1} parent=1 // pred_region
      %s80 = ssub.s32 128, 128
      %81 = vsyncadd [#allocation4], %s80
      %s83 = sshll.u32 [#allocation7], 4
      %s84 = int_to_ptr.vmem [resolvable:$true] %s83
      %86 = dma.vmem_to_hbm [thread:$0]  %s84, 128, %s2, [#allocation4]
    $region25: #{tpu_custom_call.1} parent=1 // pred_fallthru
      _
    // Predicated region
    $region26: #{tpu_custom_call.1} parent=1 // pred_check
      _
    $region27: #{tpu_custom_call.1} parent=1 // pred_check_branch
      %88 = sbr.rel (0) target = $region29
    $region28: #{tpu_custom_call.1} parent=1 // pred_region
      %s90 = ssub.s32 128, 128
      %91 = vsyncadd [#allocation9], %s90
      %s93 = sshll.u32 [#allocation8], 4
      %s94 = int_to_ptr.vmem [resolvable:$true] %s93
      %96 = dma.vmem_to_hbm [thread:$0]  %s94, 128, %s3, [#allocation9]
    $region29: #{tpu_custom_call.1} parent=1 // pred_fallthru
      _
    // Predicated region
    $region30: #{tpu_custom_call.1} parent=1 // pred_check
      _
    $region31: #{tpu_custom_call.1} parent=1 // pred_check_branch
      %98 = sbr.rel (0) target = $region33
    $region32: #{tpu_custom_call.1} parent=1 // pred_region
      %99 = dma.done [#allocation4], 128
    $region33: #{tpu_custom_call.1} parent=1 // pred_fallthru
      _
    // Predicated region
    $region34: #{tpu_custom_call.1} parent=1 // pred_check
      _
    $region35: #{tpu_custom_call.1} parent=1 // pred_check_branch
      %101 = sbr.rel (0) target = $region37
    $region36: #{tpu_custom_call.1} parent=1 // pred_region
      %102 = dma.done [#allocation9], 128
    $region37: #{tpu_custom_call.1} parent=1 // pred_fallthru
      _
    %103 = vsyncpa [#allocation3], 1
    %104 = vsyncpa [#allocation6], 1
    %105 = vsyncpa [#allocation4], 1
    %106 = vsyncpa [#allocation9], 1

</llo_original>
